<compile_context>
chip_gen: v5e
topology: v5e:2x2
jax: 0.10.0
libtpu: 0.0.40
codegen_flags: <defaults>
</compile_context>

<pallas_src>
import math
from functools import partial

import jax
import jax.numpy as jnp
from jax.experimental import pallas as pl
from jax.experimental.pallas import tpu as pltpu

_LANE = 128
_SUBLANE_BF16 = 16   # bf16 packs 16 sublanes per vreg
_NEG_INF = -1e30     # finite "minus infinity" for padded logits columns


def _round_up(x, m):
    return ((x + m - 1) // m) * m


def _elu(x):
    # F.elu(alpha=1.0).  exp argument clamped to <= 0 so it never overflows.
    # TODO(synk): switch to jnp.expm1 for better small-|x| accuracy once the
    # Mosaic lowering for expm1 is confirmed on all target chips.
    return jnp.where(x > 0, x, jnp.exp(jnp.minimum(x, 0.0)) - 1.0)


def actor_kernel(state_ref, rnn_ref,
                 w1a_ref, w1b_ref, w2_ref, w3_ref, w4_ref, wo_ref,
                 b_ref, logp_ref):
    """5-layer ELU MLP + numerically-stable log-softmax for one row tile."""
    h_pad = w2_ref.shape[0]
    a_pad = wo_ref.shape[1]

    # fc1 on the split input (bf16 MXU inputs, f32 accumulate)
    h = jnp.dot(state_ref[...], w1a_ref[...], preferred_element_type=jnp.float32)
    h = h + jnp.dot(rnn_ref[...], w1b_ref[...], preferred_element_type=jnp.float32)
    h = _elu(h + b_ref[0:1, :h_pad])
    h = _elu(jnp.dot(h.astype(jnp.bfloat16), w2_ref[...],
                     preferred_element_type=jnp.float32) + b_ref[1:2, :h_pad])
    h = _elu(jnp.dot(h.astype(jnp.bfloat16), w3_ref[...],
                     preferred_element_type=jnp.float32) + b_ref[2:3, :h_pad])
    h = _elu(jnp.dot(h.astype(jnp.bfloat16), w4_ref[...],
                     preferred_element_type=jnp.float32) + b_ref[3:4, :h_pad])
    logits = jnp.dot(h.astype(jnp.bfloat16), wo_ref[...],
                     preferred_element_type=jnp.float32) + b_ref[4:5, :a_pad]

    # log-softmax; padded action columns carry a -1e30 bias, so they contribute
    # exp(-huge) = 0 and never perturb the real columns' statistics.
    m = jnp.max(logits, axis=-1, keepdims=True)
    z = logits - m
    lse = jnp.log(jnp.sum(jnp.exp(z), axis=-1, keepdims=True))
    logp_ref[...] = z - lse


# ----------------------------------------------------------------------------
# Capability / hardware probes (run once, eagerly, outside any jit trace).
# ----------------------------------------------------------------------------
_BUFFERED_ONE = None
_VMEM_LIMIT = None


def _buffered_one_supported():
    """Probe whether pipeline_mode=pl.Buffered(1) compiles+runs; fall back to
    default double-buffering for the resident weights otherwise."""
    global _BUFFERED_ONE
    if _BUFFERED_ONE is None:
        try:
            def _k(x_ref, o_ref):
                o_ref[...] = x_ref[...]
            x = jnp.zeros((8, 128), jnp.float32)
            out = pl.pallas_call(
                _k,
                grid=(1,),
                in_specs=[pl.BlockSpec((8, 128), lambda i: (0, 0),
                                       pipeline_mode=pl.Buffered(1))],
                out_specs=pl.BlockSpec((8, 128), lambda i: (0, 0)),
                out_shape=jax.ShapeDtypeStruct((8, 128), jnp.float32),
            )(x)
            jax.block_until_ready(out)
            _BUFFERED_ONE = True
        except Exception:
            _BUFFERED_ONE = False
    return _BUFFERED_ONE


def _vmem_limit_bytes():
    """Generation-aware VMEM budget: ~3/4 of physical VMEM per TensorCore
    (48 MiB on v7x's 64 MiB, 96 MiB on v5e/v6e's 128 MiB)."""
    global _VMEM_LIMIT
    if _VMEM_LIMIT is None:
        try:
            phys = int(pltpu.get_tpu_info().vmem_capacity_bytes)
        except Exception:
            phys = 64 * 1024 * 1024
        _VMEM_LIMIT = int(min(96 * 1024 * 1024,
                              max(32 * 1024 * 1024, (phys * 3) // 4)))
    return _VMEM_LIMIT


# ----------------------------------------------------------------------------
# Parameter preparation
# ----------------------------------------------------------------------------
def prepare_actor_params(params, state_feat):
    """One-time prep: split W1, zero-pad feature dims to 128 lanes, cast
    matmul operands to bf16, and stack all biases into one f32 slab."""
    hidden_dim = params["b1"].shape[-1]
    action_dim = params["bo"].shape[-1]
    h_pad = _round_up(hidden_dim, _LANE)
    a_pad = _round_up(action_dim, _LANE)
    b_cols = max(h_pad, a_pad)

    # TODO(synk): on v6e/v7x consider also padding the fc1 contraction dims
    # (state_feat / rnn_feat) to multiples of 256 (128 on v5e) together with
    # the activations upstream, so every MXU K-pass is full.

    def pad_w(w, in_pad, out_pad):
        fi, fo = w.shape
        return jnp.pad(w, ((0, in_pad - fi), (0, out_pad - fo))).astype(jnp.bfloat16)

    def bias_row(b, fill):
        row = jnp.full((b_cols,), fill, jnp.float32)
        return row.at[:b.shape[-1]].set(b.reshape(-1).astype(jnp.float32))

    w1 = params["w1"]
    rnn_feat = w1.shape[0] - state_feat

    biases = jnp.zeros((8, b_cols), jnp.float32)
    biases = biases.at[0].set(bias_row(params["b1"], 0.0))
    biases = biases.at[1].set(bias_row(params["b2"], 0.0))
    biases = biases.at[2].set(bias_row(params["b3"], 0.0))
    biases = biases.at[3].set(bias_row(params["b4"], 0.0))
    biases = biases.at[4].set(bias_row(params["bo"], _NEG_INF))

    prepared = dict(
        w1a=pad_w(w1[:state_feat], state_feat, h_pad),
        w1b=pad_w(w1[state_feat:], rnn_feat, h_pad),
        w2=pad_w(params["w2"], h_pad, h_pad),
        w3=pad_w(params["w3"], h_pad, h_pad),
        w4=pad_w(params["w4"], h_pad, h_pad),
        wo=pad_w(params["wo"], h_pad, a_pad),
        biases=biases,
    )
    # Populate the capability / hardware caches while we are guaranteed to be
    # outside any jit trace.
    _buffered_one_supported()
    _vmem_limit_bytes()
    return prepared


_WEIGHT_ORDER = ("w1a", "w1b", "w2", "w3", "w4", "wo", "biases")


# ----------------------------------------------------------------------------
# Kernel wrapper
# ----------------------------------------------------------------------------
def actor_log_probs_pallas(state, rnn_hidden, prepared, action_dim, *, row_tile=512):
    """Row-tiled, weights-resident MLP + log-softmax.  Returns [batch, action_dim]."""
    batch = state.shape[0]
    state = state.astype(jnp.bfloat16)
    rnn_hidden = rnn_hidden.astype(jnp.bfloat16)

    # Tiny sublane-only pad (<= 15 rows) instead of rounding the batch up to a
    # whole row tile; the grid is ragged (pl.cdiv) so there are no wasted
    # full-tile MXU passes and no large wrapper-side HBM copy.
    padded_batch = _round_up(batch, _SUBLANE_BF16)
    if padded_batch != batch:
        state = jnp.pad(state, ((0, padded_batch - batch), (0, 0)))
        rnn_hidden = jnp.pad(rnn_hidden, ((0, padded_batch - batch), (0, 0)))

    # Row tile: large enough to amortize the ~0.35 us per-grid-step overhead,
    # never larger than the (sublane-padded) batch.
    # TODO(synk): sweep row_tile in {512, 1024} per generation (v5e prefers 512
    # due to its 2 vector-load slots / f32-only VPU).
    tm = min(row_tile, padded_batch)
    grid = (pl.cdiv(padded_batch, tm),)

    h_pad = prepared["w2"].shape[0]
    a_pad = prepared["wo"].shape[1]
    weight_args = tuple(prepared[k] for k in _WEIGHT_ORDER)

    def row_spec(feat):
        return pl.BlockSpec((tm, feat), lambda i: (i, 0))

    if _buffered_one_supported():
        # Weights never change block index -> single-buffer them (drops the
        # useless second VMEM copy; matters most on v7x's 64 MiB VMEM).
        def resident_spec(arr):
            return pl.BlockSpec(arr.shape, lambda i: (0, 0),
                                pipeline_mode=pl.Buffered(1))
    else:
        def resident_spec(arr):
            return pl.BlockSpec(arr.shape, lambda i: (0, 0))

    sf = state.shape[1]
    rf = rnn_hidden.shape[1]
    flops = 2 * padded_batch * (sf * h_pad + rf * h_pad
                                + 3 * h_pad * h_pad + h_pad * a_pad)
    transcendentals = padded_batch * (4 * h_pad + a_pad)
    bytes_accessed = (
        state.size * state.dtype.itemsize
        + rnn_hidden.size * rnn_hidden.dtype.itemsize
        + sum(int(w.size) * w.dtype.itemsize for w in weight_args)
        + padded_batch * a_pad * 4)

    log_probs = pl.pallas_call(
        actor_kernel,
        grid=grid,
        in_specs=[row_spec(sf), row_spec(rf)]
                 + [resident_spec(w) for w in weight_args],
        out_specs=pl.BlockSpec((tm, a_pad), lambda i: (i, 0)),
        out_shape=jax.ShapeDtypeStruct((padded_batch, a_pad), jnp.float32),
        compiler_params=pltpu.CompilerParams(
            # TODO(synk): on v7x verify the row axis actually shards across
            # both TensorCores; if not, switch to pltpu.CORE_PARALLEL or an
            # explicit pl.core_map over a TC mesh.
            dimension_semantics=("parallel",),
            vmem_limit_bytes=_vmem_limit_bytes(),
        ),
        cost_estimate=pl.CostEstimate(
            flops=int(flops),
            transcendentals=int(transcendentals),
            bytes_accessed=int(bytes_accessed)),
    )(state, rnn_hidden, *weight_args)

    return log_probs[:batch, :action_dim]


# TODO(synk): wrap actor_log_probs_pallas in jax.custom_vjp (with a backward
# kernel or a plain-JAX recompute) before using it on the actor training path;
# pallas_call has no reverse-mode rule by default.
@partial(jax.jit, static_argnames=("action_dim", "eval_mode"))
def actor_forward(prepared, state, rnn_hidden, key, action_dim, eval_mode=False):
    """Mirrors Actor.forward(state, rnn_hidden, eval)."""
    log_probs = actor_log_probs_pallas(state, rnn_hidden, prepared, action_dim)

    if eval_mode:
        # argmax(log_softmax(logits)) == argmax(logits)
        action = jax.nn.one_hot(jnp.argmax(log_probs, axis=1), action_dim,
                                dtype=jnp.float32)
        return action, None, None

    probs = jnp.exp(log_probs)
    # OneHotCategorical.sample(): categorical is invariant to the per-row
    # constant, so log_probs can be used directly as logits.
    sample = jax.nn.one_hot(jax.random.categorical(key, log_probs, axis=1),
                            action_dim, dtype=jnp.float32)
    # straight-through: action = sample + probs - probs.detach()
    action = sample + probs - jax.lax.stop_gradient(probs)
    value = jnp.round(jax.lax.stop_gradient(action))
    # OneHotCategorical.log_prob(value) = sum(value * log_softmax(logits), -1)
    action_log_prob = jnp.sum(value * log_probs, axis=1)
    # OneHotCategorical.entropy() = -sum(probs * log_probs, -1)
    action_entropy = -jnp.sum(probs * log_probs, axis=1)
    return action, action_log_prob, action_entropy


def init_actor_params(key, action_dim, hidden_dim, rnn_hidden_dim,
                      state_dim, num_classes):
    """PyTorch-style (uniform +-1/sqrt(fan_in)) init; weights stored [in, out]."""
    in_dim = state_dim * num_classes + rnn_hidden_dim
    dims = [(in_dim, hidden_dim),
            (hidden_dim, hidden_dim),
            (hidden_dim, hidden_dim),
            (hidden_dim, hidden_dim),
            (hidden_dim, action_dim)]
    names = ["1", "2", "3", "4", "o"]
    params = {}
    keys = jax.random.split(key, 2 * len(dims))
    for i, ((fan_in, fan_out), n) in enumerate(zip(dims, names)):
        bound = 1.0 / math.sqrt(fan_in)
        params[f"w{n}"] = jax.random.uniform(
            keys[2 * i], (fan_in, fan_out), jnp.float32, -bound, bound)
        params[f"b{n}"] = jax.random.uniform(
            keys[2 * i + 1], (1, fan_out), jnp.float32, -bound, bound)
    return params


def reference_log_probs(params, state, rnn_hidden):
    """Pure-JAX f32 reference for correctness checking."""
    x = jnp.concatenate([state, rnn_hidden], axis=1)
    h = jax.nn.elu(x @ params["w1"] + params["b1"])
    h = jax.nn.elu(h @ params["w2"] + params["b2"])
    h = jax.nn.elu(h @ params["w3"] + params["b3"])
    h = jax.nn.elu(h @ params["w4"] + params["b4"])
    logits = h @ params["wo"] + params["bo"]
    return jax.nn.log_softmax(logits, axis=-1)


if __name__ == "__main__":
    # Small, shape-consistent configuration.
    batch = 2
    action_dim = 6
    hidden_dim = 32
    rnn_hidden_dim = 16
    state_dim = 4
    num_classes = 8   # state input is the flattened [B, state_dim * num_classes]
    state_feat = state_dim * num_classes

    root = jax.random.PRNGKey(0)
    k_params, k_state, k_rnn, k_sample = jax.random.split(root, 4)

    params = init_actor_params(k_params, action_dim, hidden_dim,
                               rnn_hidden_dim, state_dim, num_classes)
    prepared = prepare_actor_params(params, state_feat)

    state = jax.random.normal(k_state, (batch, state_feat), dtype=jnp.float32)
    rnn_hidden = jax.random.normal(k_rnn, (batch, rnn_hidden_dim),
                                   dtype=jnp.float32)

    # Correctness: kernel log_probs vs. pure-JAX f32 reference
    # (tolerance covers the bf16 matmul inputs).
    lp_kernel = actor_log_probs_pallas(state, rnn_hidden, prepared, action_dim)
    lp_ref = reference_log_probs(params, state, rnn_hidden)
    jax.block_until_ready((lp_kernel, lp_ref))
    assert lp_kernel.shape == (batch, action_dim)
    assert bool(jnp.allclose(lp_kernel, lp_ref, atol=0.1, rtol=0.1)), \
        "log_probs mismatch vs reference"

    # Training-mode forward (sample + log_prob + entropy).
    action, action_log_prob, action_entropy = actor_forward(
        prepared, state, rnn_hidden, k_sample, action_dim, eval_mode=False)
    jax.block_until_ready((action, action_log_prob, action_entropy))

    # Eval-mode forward (argmax one-hot).
    action_eval, _, _ = actor_forward(
        prepared, state, rnn_hidden, k_sample, action_dim, eval_mode=True)
    jax.block_until_ready(action_eval)

    assert action.shape == (batch, action_dim)
    assert action_log_prob.shape == (batch,)
    assert action_entropy.shape == (batch,)
    assert action_eval.shape == (batch, action_dim)
    print("KERNEL_OK")
</pallas_src>

<mosaic_0001>
module attributes {stable_mosaic.version = 11 : i64} {
  func.func @_k(%arg0: i32, %arg1: memref<8x128xf32, #tpu.memory_space<vmem>>, %arg2: memref<8x128xf32, #tpu.memory_space<vmem>>) attributes {dimension_semantics = [#tpu.dimension_semantics<arbitrary>], iteration_bounds = array<i64: 1>, scalar_prefetch = 0 : i64, scratch_operands = 0 : i64, tpu.core_type = #tpu.core_type<tc>, window_params = [{pipeline_mode = #tpu.pipeline_mode<synchronous>, transform_indices = @transform_0, window_bounds = array<i64: 8, 128>}, {pipeline_mode = #tpu.pipeline_mode<synchronous>, transform_indices = @transform_1, window_bounds = array<i64: 8, 128>}]} {
    %c0 = arith.constant 0 : index
    %c0_0 = arith.constant 0 : index
    %0 = vector.load %arg1[%c0, %c0_0] : memref<8x128xf32, #tpu.memory_space<vmem>>, vector<8x128xf32>
    %c0_1 = arith.constant 0 : index
    %c0_2 = arith.constant 0 : index
    %1 = vector.load %arg2[%c0_1, %c0_2] : memref<8x128xf32, #tpu.memory_space<vmem>>, vector<8x128xf32>
    tpu.vector_store %arg2[%c0_1, %c0_2], %0 {strides = array<i32>} : memref<8x128xf32, #tpu.memory_space<vmem>>, vector<8x128xf32>,
    return
  }
  func.func @transform_0(%arg0: i32) -> (i32, i32) {
    %c0_i32 = arith.constant 0 : i32
    %c0_i32_0 = arith.constant 0 : i32
    %c0_i32_1 = arith.constant 0 : i32
    return %c0_i32, %c0_i32_0 : i32, i32
  }
  func.func @transform_1(%arg0: i32) -> (i32, i32) {
    %c0_i32 = arith.constant 0 : i32
    %c0_i32_0 = arith.constant 0 : i32
    %c0_i32_1 = arith.constant 0 : i32
    return %c0_i32, %c0_i32_0 : i32, i32
  }
}

module attributes {stable_mosaic.version = 11 : i64} {
  func.func @actor_kernel(%arg0: i32, %arg1: memref<16x32xbf16, #tpu.memory_space<vmem>>, %arg2: memref<16x16xbf16, #tpu.memory_space<vmem>>, %arg3: memref<32x128xbf16, #tpu.memory_space<vmem>>, %arg4: memref<16x128xbf16, #tpu.memory_space<vmem>>, %arg5: memref<128x128xbf16, #tpu.memory_space<vmem>>, %arg6: memref<128x128xbf16, #tpu.memory_space<vmem>>, %arg7: memref<128x128xbf16, #tpu.memory_space<vmem>>, %arg8: memref<128x128xbf16, #tpu.memory_space<vmem>>, %arg9: memref<8x128xf32, #tpu.memory_space<vmem>>, %arg10: memref<16x128xf32, #tpu.memory_space<vmem>>) attributes {dimension_semantics = [#tpu.dimension_semantics<parallel>], iteration_bounds = array<i64: 1>, scalar_prefetch = 0 : i64, scratch_operands = 0 : i64, tpu.core_type = #tpu.core_type<tc>, window_params = [{transform_indices = @transform_0, window_bounds = array<i64: 16, 32>}, {transform_indices = @transform_1, window_bounds = array<i64: 16, 16>}, {pipeline_mode = #tpu.pipeline_mode<synchronous>, transform_indices = @transform_2, window_bounds = array<i64: 32, 128>}, {pipeline_mode = #tpu.pipeline_mode<synchronous>, transform_indices = @transform_3, window_bounds = array<i64: 16, 128>}, {pipeline_mode = #tpu.pipeline_mode<synchronous>, transform_indices = @transform_4, window_bounds = array<i64: 128, 128>}, {pipeline_mode = #tpu.pipeline_mode<synchronous>, transform_indices = @transform_5, window_bounds = array<i64: 128, 128>}, {pipeline_mode = #tpu.pipeline_mode<synchronous>, transform_indices = @transform_6, window_bounds = array<i64: 128, 128>}, {pipeline_mode = #tpu.pipeline_mode<synchronous>, transform_indices = @transform_7, window_bounds = array<i64: 128, 128>}, {pipeline_mode = #tpu.pipeline_mode<synchronous>, transform_indices = @transform_8, window_bounds = array<i64: 8, 128>}, {transform_indices = @transform_9, window_bounds = array<i64: 16, 128>}]} {
    %c0 = arith.constant 0 : index
    %c0_0 = arith.constant 0 : index
    %0 = vector.load %arg1[%c0, %c0_0] : memref<16x32xbf16, #tpu.memory_space<vmem>>, vector<16x32xbf16>
    %c0_1 = arith.constant 0 : index
    %c0_2 = arith.constant 0 : index
    %1 = vector.load %arg3[%c0_1, %c0_2] : memref<32x128xbf16, #tpu.memory_space<vmem>>, vector<32x128xbf16>
    %cst = arith.constant dense<0.000000e+00> : vector<16x128xf32>
    %2 = tpu.matmul %0, %1, %cst {dimension_numbers = #tpu.dot_dimension_numbers<[1], [0], [0], [1], [0, 0, 1, 1], [], []>} : vector<16x32xbf16>, vector<32x128xbf16>, vector<16x128xf32> -> vector<16x128xf32>
    %c0_3 = arith.constant 0 : index
    %c0_4 = arith.constant 0 : index
    %3 = vector.load %arg2[%c0_3, %c0_4] : memref<16x16xbf16, #tpu.memory_space<vmem>>, vector<16x16xbf16>
    %c0_5 = arith.constant 0 : index
    %c0_6 = arith.constant 0 : index
    %4 = vector.load %arg4[%c0_5, %c0_6] : memref<16x128xbf16, #tpu.memory_space<vmem>>, vector<16x128xbf16>
    %cst_7 = arith.constant dense<0.000000e+00> : vector<16x128xf32>
    %5 = tpu.matmul %3, %4, %cst_7 {dimension_numbers = #tpu.dot_dimension_numbers<[1], [0], [0], [1], [0, 0, 1, 1], [], []>} : vector<16x16xbf16>, vector<16x128xbf16>, vector<16x128xf32> -> vector<16x128xf32>
    %6 = arith.addf %2, %5 : vector<16x128xf32>
    %c0_8 = arith.constant 0 : index
    %c0_9 = arith.constant 0 : index
    %7 = vector.load %arg9[%c0_8, %c0_9] : memref<8x128xf32, #tpu.memory_space<vmem>>, vector<1x128xf32>
    %8 = vector.broadcast %7 : vector<1x128xf32> to vector<16x128xf32>
    %9 = arith.addf %6, %8 : vector<16x128xf32>
    %cst_10 = arith.constant 0.000000e+00 : f32
    %10 = vector.broadcast %cst_10 : f32 to vector<16x128xf32>
    %11 = arith.cmpf ogt, %9, %10 : vector<16x128xf32>
    %cst_11 = arith.constant 0.000000e+00 : f32
    %12 = vector.broadcast %cst_11 : f32 to vector<16x128xf32>
    %13 = arith.minimumf %9, %12 : vector<16x128xf32>
    %14 = math.exp %13 : vector<16x128xf32>
    %cst_12 = arith.constant 1.000000e+00 : f32
    %15 = vector.broadcast %cst_12 : f32 to vector<16x128xf32>
    %16 = arith.subf %14, %15 : vector<16x128xf32>
    %17 = arith.select %11, %9, %16 : vector<16x128xi1>, vector<16x128xf32>
    %18 = arith.truncf %17 : vector<16x128xf32> to vector<16x128xbf16>
    %c0_13 = arith.constant 0 : index
    %c0_14 = arith.constant 0 : index
    %19 = vector.load %arg5[%c0_13, %c0_14] : memref<128x128xbf16, #tpu.memory_space<vmem>>, vector<128x128xbf16>
    %cst_15 = arith.constant dense<0.000000e+00> : vector<16x128xf32>
    %20 = tpu.matmul %18, %19, %cst_15 {dimension_numbers = #tpu.dot_dimension_numbers<[1], [0], [0], [1], [0, 0, 1, 1], [], []>} : vector<16x128xbf16>, vector<128x128xbf16>, vector<16x128xf32> -> vector<16x128xf32>
    %c1 = arith.constant 1 : index
    %c0_16 = arith.constant 0 : index
    %21 = vector.load %arg9[%c1, %c0_16] : memref<8x128xf32, #tpu.memory_space<vmem>>, vector<1x128xf32>
    %22 = vector.broadcast %21 : vector<1x128xf32> to vector<16x128xf32>
    %23 = arith.addf %20, %22 : vector<16x128xf32>
    %cst_17 = arith.constant 0.000000e+00 : f32
    %24 = vector.broadcast %cst_17 : f32 to vector<16x128xf32>
    %25 = arith.cmpf ogt, %23, %24 : vector<16x128xf32>
    %cst_18 = arith.constant 0.000000e+00 : f32
    %26 = vector.broadcast %cst_18 : f32 to vector<16x128xf32>
    %27 = arith.minimumf %23, %26 : vector<16x128xf32>
    %28 = math.exp %27 : vector<16x128xf32>
    %cst_19 = arith.constant 1.000000e+00 : f32
    %29 = vector.broadcast %cst_19 : f32 to vector<16x128xf32>
    %30 = arith.subf %28, %29 : vector<16x128xf32>
    %31 = arith.select %25, %23, %30 : vector<16x128xi1>, vector<16x128xf32>
    %32 = arith.truncf %31 : vector<16x128xf32> to vector<16x128xbf16>
    %c0_20 = arith.constant 0 : index
    %c0_21 = arith.constant 0 : index
    %33 = vector.load %arg6[%c0_20, %c0_21] : memref<128x128xbf16, #tpu.memory_space<vmem>>, vector<128x128xbf16>
    %cst_22 = arith.constant dense<0.000000e+00> : vector<16x128xf32>
    %34 = tpu.matmul %32, %33, %cst_22 {dimension_numbers = #tpu.dot_dimension_numbers<[1], [0], [0], [1], [0, 0, 1, 1], [], []>} : vector<16x128xbf16>, vector<128x128xbf16>, vector<16x128xf32> -> vector<16x128xf32>
    %c2 = arith.constant 2 : index
    %c0_23 = arith.constant 0 : index
    %35 = vector.load %arg9[%c2, %c0_23] : memref<8x128xf32, #tpu.memory_space<vmem>>, vector<1x128xf32>
    %36 = vector.broadcast %35 : vector<1x128xf32> to vector<16x128xf32>
    %37 = arith.addf %34, %36 : vector<16x128xf32>
    %cst_24 = arith.constant 0.000000e+00 : f32
    %38 = vector.broadcast %cst_24 : f32 to vector<16x128xf32>
    %39 = arith.cmpf ogt, %37, %38 : vector<16x128xf32>
    %cst_25 = arith.constant 0.000000e+00 : f32
    %40 = vector.broadcast %cst_25 : f32 to vector<16x128xf32>
    %41 = arith.minimumf %37, %40 : vector<16x128xf32>
    %42 = math.exp %41 : vector<16x128xf32>
    %cst_26 = arith.constant 1.000000e+00 : f32
    %43 = vector.broadcast %cst_26 : f32 to vector<16x128xf32>
    %44 = arith.subf %42, %43 : vector<16x128xf32>
    %45 = arith.select %39, %37, %44 : vector<16x128xi1>, vector<16x128xf32>
    %46 = arith.truncf %45 : vector<16x128xf32> to vector<16x128xbf16>
    %c0_27 = arith.constant 0 : index
    %c0_28 = arith.constant 0 : index
    %47 = vector.load %arg7[%c0_27, %c0_28] : memref<128x128xbf16, #tpu.memory_space<vmem>>, vector<128x128xbf16>
    %cst_29 = arith.constant dense<0.000000e+00> : vector<16x128xf32>
    %48 = tpu.matmul %46, %47, %cst_29 {dimension_numbers = #tpu.dot_dimension_numbers<[1], [0], [0], [1], [0, 0, 1, 1], [], []>} : vector<16x128xbf16>, vector<128x128xbf16>, vector<16x128xf32> -> vector<16x128xf32>
    %c3 = arith.constant 3 : index
    %c0_30 = arith.constant 0 : index
    %49 = vector.load %arg9[%c3, %c0_30] : memref<8x128xf32, #tpu.memory_space<vmem>>, vector<1x128xf32>
    %50 = vector.broadcast %49 : vector<1x128xf32> to vector<16x128xf32>
    %51 = arith.addf %48, %50 : vector<16x128xf32>
    %cst_31 = arith.constant 0.000000e+00 : f32
    %52 = vector.broadcast %cst_31 : f32 to vector<16x128xf32>
    %53 = arith.cmpf ogt, %51, %52 : vector<16x128xf32>
    %cst_32 = arith.constant 0.000000e+00 : f32
    %54 = vector.broadcast %cst_32 : f32 to vector<16x128xf32>
    %55 = arith.minimumf %51, %54 : vector<16x128xf32>
    %56 = math.exp %55 : vector<16x128xf32>
    %cst_33 = arith.constant 1.000000e+00 : f32
    %57 = vector.broadcast %cst_33 : f32 to vector<16x128xf32>
    %58 = arith.subf %56, %57 : vector<16x128xf32>
    %59 = arith.select %53, %51, %58 : vector<16x128xi1>, vector<16x128xf32>
    %60 = arith.truncf %59 : vector<16x128xf32> to vector<16x128xbf16>
    %c0_34 = arith.constant 0 : index
    %c0_35 = arith.constant 0 : index
    %61 = vector.load %arg8[%c0_34, %c0_35] : memref<128x128xbf16, #tpu.memory_space<vmem>>, vector<128x128xbf16>
    %cst_36 = arith.constant dense<0.000000e+00> : vector<16x128xf32>
    %62 = tpu.matmul %60, %61, %cst_36 {dimension_numbers = #tpu.dot_dimension_numbers<[1], [0], [0], [1], [0, 0, 1, 1], [], []>} : vector<16x128xbf16>, vector<128x128xbf16>, vector<16x128xf32> -> vector<16x128xf32>
    %c4 = arith.constant 4 : index
    %c0_37 = arith.constant 0 : index
    %63 = vector.load %arg9[%c4, %c0_37] : memref<8x128xf32, #tpu.memory_space<vmem>>, vector<1x128xf32>
    %64 = vector.broadcast %63 : vector<1x128xf32> to vector<16x128xf32>
    %65 = arith.addf %62, %64 : vector<16x128xf32>
    %cst_38 = arith.constant dense<0xFF800000> : vector<16xf32>
    %66 = vector.multi_reduction <maximumf>, %65, %cst_38 [1] : vector<16x128xf32> to vector<16xf32>
    %67 = vector.shape_cast %66 : vector<16xf32> to vector<16x1xf32>
    %68 = vector.broadcast %67 : vector<16x1xf32> to vector<16x128xf32>
    %69 = arith.subf %65, %68 : vector<16x128xf32>
    %70 = math.exp %69 : vector<16x128xf32>
    %cst_39 = arith.constant dense<0.000000e+00> : vector<16xf32>
    %71 = vector.multi_reduction <add>, %70, %cst_39 [1] : vector<16x128xf32> to vector<16xf32>
    %72 = vector.shape_cast %71 : vector<16xf32> to vector<16x1xf32>
    %73 = math.log %72 : vector<16x1xf32>
    %74 = vector.broadcast %73 : vector<16x1xf32> to vector<16x128xf32>
    %75 = arith.subf %69, %74 : vector<16x128xf32>
    %c0_40 = arith.constant 0 : index
    %c0_41 = arith.constant 0 : index
    %76 = vector.load %arg10[%c0_40, %c0_41] : memref<16x128xf32, #tpu.memory_space<vmem>>, vector<16x128xf32>
    tpu.vector_store %arg10[%c0_40, %c0_41], %75 {strides = array<i32>} : memref<16x128xf32, #tpu.memory_space<vmem>>, vector<16x128xf32>,
    return
  }
  func.func @transform_0(%arg0: i32) -> (i32, i32) {
    %c0_i32 = arith.constant 0 : i32
    %c0_i32_0 = arith.constant 0 : i32
    return %arg0, %c0_i32 : i32, i32
  }
  func.func @transform_1(%arg0: i32) -> (i32, i32) {
    %c0_i32 = arith.constant 0 : i32
    %c0_i32_0 = arith.constant 0 : i32
    return %arg0, %c0_i32 : i32, i32
  }
  func.func @transform_2(%arg0: i32) -> (i32, i32) {
    %c0_i32 = arith.constant 0 : i32
    %c0_i32_0 = arith.constant 0 : i32
    %c0_i32_1 = arith.constant 0 : i32
    return %c0_i32, %c0_i32_0 : i32, i32
  }
  func.func @transform_3(%arg0: i32) -> (i32, i32) {
    %c0_i32 = arith.constant 0 : i32
    %c0_i32_0 = arith.constant 0 : i32
    %c0_i32_1 = arith.constant 0 : i32
    return %c0_i32, %c0_i32_0 : i32, i32
  }
  func.func @transform_4(%arg0: i32) -> (i32, i32) {
    %c0_i32 = arith.constant 0 : i32
    %c0_i32_0 = arith.constant 0 : i32
    %c0_i32_1 = arith.constant 0 : i32
    return %c0_i32, %c0_i32_0 : i32, i32
  }
  func.func @transform_5(%arg0: i32) -> (i32, i32) {
    %c0_i32 = arith.constant 0 : i32
    %c0_i32_0 = arith.constant 0 : i32
    %c0_i32_1 = arith.constant 0 : i32
    return %c0_i32, %c0_i32_0 : i32, i32
  }
  func.func @transform_6(%arg0: i32) -> (i32, i32) {
    %c0_i32 = arith.constant 0 : i32
    %c0_i32_0 = arith.constant 0 : i32
    %c0_i32_1 = arith.constant 0 : i32
    return %c0_i32, %c0_i32_0 : i32, i32
  }
  func.func @transform_7(%arg0: i32) -> (i32, i32) {
    %c0_i32 = arith.constant 0 : i32
    %c0_i32_0 = arith.constant 0 : i32
    %c0_i32_1 = arith.constant 0 : i32
    return %c0_i32, %c0_i32_0 : i32, i32
  }
  func.func @transform_8(%arg0: i32) -> (i32, i32) {
    %c0_i32 = arith.constant 0 : i32
    %c0_i32_0 = arith.constant 0 : i32
    %c0_i32_1 = arith.constant 0 : i32
    return %c0_i32, %c0_i32_0 : i32, i32
  }
  func.func @transform_9(%arg0: i32) -> (i32, i32) {
    %c0_i32 = arith.constant 0 : i32
    %c0_i32_0 = arith.constant 0 : i32
    return %arg0, %c0_i32 : i32, i32
  }
}

</mosaic_0001>

<llo_original>
// kernel: tpu_custom_call.1
$region0: #{tpu_custom_call.1}
  #allocation0 [shape = 'u32[]', space=smem, size = 0x4, offset = 0x4, fixed_abs, tag = 'smem constant byte address 0x4 - core index']
  #allocation1 [shape = 'u32[72,128]{1,0:T(1,128)}', space=vmem, size = 0x9000, scoped, tag = 'internal scratch']
  %s0 = inlined_call_operand.hbm [shape: f32[8,128], index: 0, kind: input, shape index: {}]
  %s1 = inlined_call_operand.hbm [shape: f32[8,128], index: 1, kind: output, shape index: {}]
  %s2 = sld [smem:[#allocation0]]
  $region18: #{tpu_custom_call.1} parent=0
    _
  %s4 = ssub.s32 1, %s2
  %s5 = scalar_select 0, %s4, %s2
  $region1: #{tpu_custom_call.1} parent=0
    #allocation2 [shape = 'u8[4096]{0}', space=vmem, size = 0x1000, scoped, tag = 'input window, operand 0, single buffered']
    #allocation3 [shape = 's32[1]{0}', space=sflag, size = 0x4, scoped, tag = 'scoped memory for tpu_custom_call.1']
    #allocation4 [shape = 's32[1]{0}', space=sflag, size = 0x4, scoped, tag = 'scoped memory for tpu_custom_call.1']
    #allocation5 [shape = 'u8[4096]{0}', space=vmem, size = 0x1000, scoped, tag = 'output window, operand 0, single buffered']
    %6 = vsyncpa [#allocation3], 0
    %7 = vsyncpa [#allocation4], 0
    // Predicated region
    $region2: #{tpu_custom_call.1} parent=1 // pred_check
      _
    $region3: #{tpu_custom_call.1} parent=1 // pred_check_branch
      %9 = sbr.rel (0) target = $region5
    $region4: #{tpu_custom_call.1} parent=1 // pred_region
      %11 = vsyncadd [#allocation3], 0
      %s13 = sshll.u32 %s0, 4
      %s14 = int_to_ptr.hbm [resolvable:$true] %s13
      %s15 = sshll.u32 [#allocation2], 4
      %s16 = int_to_ptr.vmem [resolvable:$true] %s15
      %18 = dma.hbm_to_vmem [thread:$0]  %s14, 128, %s16, [#allocation3]
    $region5: #{tpu_custom_call.1} parent=1 // pred_fallthru
      _
    // Predicated region
    $region6: #{tpu_custom_call.1} parent=1 // pred_check
      _
    $region7: #{tpu_custom_call.1} parent=1 // pred_check_branch
      %20 = sbr.rel (0) target = $region9
    $region8: #{tpu_custom_call.1} parent=1 // pred_region
      %22 = dma.done [#allocation3], 128
    $region9: #{tpu_custom_call.1} parent=1 // pred_fallthru
      _
    %v23 = vld [vmem:[#allocation2] sm:$0xff]
    %24 = vst [vmem:[#allocation5] sm:$0xff] %v23
    // Predicated region
    $region10: #{tpu_custom_call.1} parent=1 // pred_check
      _
    $region11: #{tpu_custom_call.1} parent=1 // pred_check_branch
      %26 = sbr.rel (0) target = $region13
    $region12: #{tpu_custom_call.1} parent=1 // pred_region
      %28 = vsyncadd [#allocation4], 0
      %s30 = sshll.u32 [#allocation5], 4
      %s31 = int_to_ptr.vmem [resolvable:$true] %s30
      %s32 = sshll.u32 %s1, 4
      %s33 = int_to_ptr.hbm [resolvable:$true] %s32
      %35 = dma.vmem_to_hbm [thread:$0]  %s31, 128, %s33, [#allocation4]
    $region13: #{tpu_custom_call.1} parent=1 // pred_fallthru
      _
    // Predicated region
    $region14: #{tpu_custom_call.1} parent=1 // pred_check
      _
    $region15: #{tpu_custom_call.1} parent=1 // pred_check_branch
      %37 = sbr.rel (0) target = $region17
    $region16: #{tpu_custom_call.1} parent=1 // pred_region
      %39 = dma.done [#allocation4], 128
    $region17: #{tpu_custom_call.1} parent=1 // pred_fallthru
      _
    %40 = vsyncpa [#allocation3], 1
    %41 = vsyncpa [#allocation4], 1

// kernel: tpu_custom_call.1
$region0: #{tpu_custom_call.1}
  #allocation0 [shape = 'u32[]', space=smem, size = 0x4, offset = 0x4, fixed_abs, tag = 'smem constant byte address 0x4 - core index']
  #allocation1 [shape = 'u32[72,128]{1,0:T(1,128)}', space=vmem, size = 0x9000, scoped, tag = 'internal scratch']
  %s0 = inlined_call_operand.hbm [shape: bf16[16,32], index: 0, kind: input, shape index: {}]
  %s1 = inlined_call_operand.hbm [shape: bf16[16,16], index: 1, kind: input, shape index: {}]
  %s2 = inlined_call_operand.hbm [shape: bf16[32,128], index: 2, kind: input, shape index: {}]
  %s3 = inlined_call_operand.hbm [shape: bf16[16,128], index: 3, kind: input, shape index: {}]
  %s4 = inlined_call_operand.hbm [shape: bf16[128,128], index: 4, kind: input, shape index: {}]
  %s5 = inlined_call_operand.hbm [shape: bf16[128,128], index: 5, kind: input, shape index: {}]
  %s6 = inlined_call_operand.hbm [shape: bf16[128,128], index: 6, kind: input, shape index: {}]
  %s7 = inlined_call_operand.hbm [shape: bf16[128,128], index: 7, kind: input, shape index: {}]
  %s8 = inlined_call_operand.hbm [shape: f32[8,128], index: 8, kind: input, shape index: {}]
  %s9 = inlined_call_operand.hbm [shape: f32[16,128], index: 9, kind: output, shape index: {}]
  %s10 = sld [smem:[#allocation0]]
  $region82: #{tpu_custom_call.1} parent=0
    _
  %s12 = ssub.s32 1, %s10
  %s13 = scalar_select 0, %s12, %s10
  $region1: #{tpu_custom_call.1} parent=0
    #allocation2 [shape = 'u8[4096]{0}', space=vmem, size = 0x1000, scoped, tag = 'input window, operand 0, single buffered']
    #allocation3 [shape = 's32[1]{0}', space=sflag, size = 0x4, scoped, tag = 'scoped memory for tpu_custom_call.1']
    #allocation4 [shape = 's32[1]{0}', space=sflag, size = 0x4, scoped, tag = 'scoped memory for tpu_custom_call.1']
    #allocation5 [shape = 'u8[4096]{0}', space=vmem, size = 0x1000, scoped, tag = 'input window, operand 1, single buffered']
    #allocation6 [shape = 's32[1]{0}', space=sflag, size = 0x4, scoped, tag = 'scoped memory for tpu_custom_call.1']
    #allocation7 [shape = 'u8[8192]{0}', space=vmem, size = 0x2000, scoped, tag = 'input window, operand 2, single buffered']
    #allocation8 [shape = 'u8[4096]{0}', space=vmem, size = 0x1000, scoped, tag = 'input window, operand 3, single buffered']
    #allocation9 [shape = 's32[1]{0}', space=sflag, size = 0x4, scoped, tag = 'scoped memory for tpu_custom_call.1']
    #allocation10 [shape = 'u8[32768]{0}', space=vmem, size = 0x8000, scoped, tag = 'input window, operand 4, single buffered']
    #allocation11 [shape = 'u8[32768]{0}', space=vmem, size = 0x8000, scoped, tag = 'input window, operand 5, single buffered']
    #allocation12 [shape = 's32[1]{0}', space=sflag, size = 0x4, scoped, tag = 'scoped memory for tpu_custom_call.1']
    #allocation13 [shape = 'u8[32768]{0}', space=vmem, size = 0x8000, scoped, tag = 'input window, operand 6, single buffered']
    #allocation14 [shape = 'u8[32768]{0}', space=vmem, size = 0x8000, scoped, tag = 'input window, operand 7, single buffered']
    #allocation15 [shape = 's32[1]{0}', space=sflag, size = 0x4, scoped, tag = 'scoped memory for tpu_custom_call.1']
    #allocation16 [shape = 'u8[4096]{0}', space=vmem, size = 0x1000, scoped, tag = 'input window, operand 8, single buffered']
    #allocation17 [shape = 'u8[8192]{0}', space=vmem, size = 0x2000, scoped, tag = 'output window, operand 0, single buffered']
    %14 = vsyncpa [#allocation3], 0
    %15 = vsyncpa [#allocation6], 0
    %16 = vsyncpa [#allocation9], 0
    %17 = vsyncpa [#allocation12], 0
    %18 = vsyncpa [#allocation15], 0
    %19 = vsyncpa [#allocation4], 0
    // Predicated region
    $region2: #{tpu_custom_call.1} parent=1 // pred_check
      _
    $region3: #{tpu_custom_call.1} parent=1 // pred_check_branch
      %21 = sbr.rel (0) target = $region5
    $region4: #{tpu_custom_call.1} parent=1 // pred_region
      %23 = vsyncadd [#allocation3], 0
      %s24 = sshll.u32 %s0, 4
      %s25 = int_to_ptr.hbm [resolvable:$true] %s24
      %s26 = sshll.u32 [#allocation2], 4
      %s27 = int_to_ptr.vmem [resolvable:$true] %s26
      %32 = dma.hbm_to_vmem [thread:$0]  %s25, 128, %s27, [#allocation3], 64, 64, 4
    $region5: #{tpu_custom_call.1} parent=1 // pred_fallthru
      _
    // Predicated region
    $region6: #{tpu_custom_call.1} parent=1 // pred_check
      _
    $region7: #{tpu_custom_call.1} parent=1 // pred_check_branch
      %34 = sbr.rel (0) target = $region9
    $region8: #{tpu_custom_call.1} parent=1 // pred_region
      %36 = vsyncadd [#allocation6], 0
      %s37 = sshll.u32 %s1, 4
      %s38 = int_to_ptr.hbm [resolvable:$true] %s37
      %s39 = sshll.u32 [#allocation5], 4
      %s40 = int_to_ptr.vmem [resolvable:$true] %s39
      %45 = dma.hbm_to_vmem [thread:$0]  %s38, 128, %s40, [#allocation6], 64, 64, 4
    $region9: #{tpu_custom_call.1} parent=1 // pred_fallthru
      _
    // Predicated region
    $region10: #{tpu_custom_call.1} parent=1 // pred_check
      _
    $region11: #{tpu_custom_call.1} parent=1 // pred_check_branch
      %47 = sbr.rel (0) target = $region13
    $region12: #{tpu_custom_call.1} parent=1 // pred_region
      %49 = vsyncadd [#allocation6], 0
      %s50 = sshll.u32 %s2, 4
      %s51 = int_to_ptr.hbm [resolvable:$true] %s50
      %s52 = sshll.u32 [#allocation7], 4
      %s53 = int_to_ptr.vmem [resolvable:$true] %s52
      %58 = dma.hbm_to_vmem [thread:$0]  %s51, 256, %s53, [#allocation6], 64, 64, 4
    $region13: #{tpu_custom_call.1} parent=1 // pred_fallthru
      _
    // Predicated region
    $region14: #{tpu_custom_call.1} parent=1 // pred_check
      _
    $region15: #{tpu_custom_call.1} parent=1 // pred_check_branch
      %60 = sbr.rel (0) target = $region17
    $region16: #{tpu_custom_call.1} parent=1 // pred_region
      %62 = vsyncadd [#allocation9], 0
      %s63 = sshll.u32 %s3, 4
      %s64 = int_to_ptr.hbm [resolvable:$true] %s63
      %s65 = sshll.u32 [#allocation8], 4
      %s66 = int_to_ptr.vmem [resolvable:$true] %s65
      %71 = dma.hbm_to_vmem [thread:$0]  %s64, 128, %s66, [#allocation9], 64, 64, 4
    $region17: #{tpu_custom_call.1} parent=1 // pred_fallthru
      _
    // Predicated region
    $region18: #{tpu_custom_call.1} parent=1 // pred_check
      _
    $region19: #{tpu_custom_call.1} parent=1 // pred_check_branch
      %73 = sbr.rel (0) target = $region21
    $region20: #{tpu_custom_call.1} parent=1 // pred_region
      %75 = vsyncadd [#allocation9], 0
      %s76 = sshll.u32 %s4, 4
      %s77 = int_to_ptr.hbm [resolvable:$true] %s76
      %s78 = sshll.u32 [#allocation10], 4
      %s79 = int_to_ptr.vmem [resolvable:$true] %s78
      %84 = dma.hbm_to_vmem [thread:$0]  %s77, 1024, %s79, [#allocation9], 64, 64, 4
    $region21: #{tpu_custom_call.1} parent=1 // pred_fallthru
      _
    // Predicated region
    $region22: #{tpu_custom_call.1} parent=1 // pred_check
      _
    $region23: #{tpu_custom_call.1} parent=1 // pred_check_branch
      %86 = sbr.rel (0) target = $region25
    $region24: #{tpu_custom_call.1} parent=1 // pred_region
      %88 = vsyncadd [#allocation12], 0
      %s89 = sshll.u32 %s5, 4
      %s90 = int_to_ptr.hbm [resolvable:$true] %s89
      %s91 = sshll.u32 [#allocation11], 4
      %s92 = int_to_ptr.vmem [resolvable:$true] %s91
      %97 = dma.hbm_to_vmem [thread:$0]  %s90, 1024, %s92, [#allocation12], 64, 64, 4
    $region25: #{tpu_custom_call.1} parent=1 // pred_fallthru
      _
    // Predicated region
    $region26: #{tpu_custom_call.1} parent=1 // pred_check
      _
    $region27: #{tpu_custom_call.1} parent=1 // pred_check_branch
      %99 = sbr.rel (0) target = $region29
    $region28: #{tpu_custom_call.1} parent=1 // pred_region
      %101 = vsyncadd [#allocation12], 0
      %s102 = sshll.u32 %s6, 4
      %s103 = int_to_ptr.hbm [resolvable:$true] %s102
      %s104 = sshll.u32 [#allocation13], 4
      %s105 = int_to_ptr.vmem [resolvable:$true] %s104
      %110 = dma.hbm_to_vmem [thread:$0]  %s103, 1024, %s105, [#allocation12], 64, 64, 4
    $region29: #{tpu_custom_call.1} parent=1 // pred_fallthru
      _
    // Predicated region
    $region30: #{tpu_custom_call.1} parent=1 // pred_check
      _
    $region31: #{tpu_custom_call.1} parent=1 // pred_check_branch
      %112 = sbr.rel (0) target = $region33
    $region32: #{tpu_custom_call.1} parent=1 // pred_region
      %114 = vsyncadd [#allocation15], 0
      %s115 = sshll.u32 %s7, 4
      %s116 = int_to_ptr.hbm [resolvable:$true] %s115
      %s117 = sshll.u32 [#allocation14], 4
      %s118 = int_to_ptr.vmem [resolvable:$true] %s117
      %123 = dma.hbm_to_vmem [thread:$0]  %s116, 1024, %s118, [#allocation15], 64, 64, 4
    $region33: #{tpu_custom_call.1} parent=1 // pred_fallthru
      _
    // Predicated region
    $region34: #{tpu_custom_call.1} parent=1 // pred_check
      _
    $region35: #{tpu_custom_call.1} parent=1 // pred_check_branch
      %125 = sbr.rel (0) target = $region37
    $region36: #{tpu_custom_call.1} parent=1 // pred_region
      %127 = vsyncadd [#allocation15], 0
      %s129 = sshll.u32 %s8, 4
      %s130 = int_to_ptr.hbm [resolvable:$true] %s129
      %s131 = sshll.u32 [#allocation16], 4
      %s132 = int_to_ptr.vmem [resolvable:$true] %s131
      %134 = dma.hbm_to_vmem [thread:$0]  %s130, 128, %s132, [#allocation15]
    $region37: #{tpu_custom_call.1} parent=1 // pred_fallthru
      _
    // Predicated region
    $region38: #{tpu_custom_call.1} parent=1 // pred_check
      _
    $region39: #{tpu_custom_call.1} parent=1 // pred_check_branch
      %136 = sbr.rel (0) target = $region41
    $region40: #{tpu_custom_call.1} parent=1 // pred_region
      %138 = dma.done [#allocation3], 128
    $region41: #{tpu_custom_call.1} parent=1 // pred_fallthru
      _
    // Predicated region
    $region42: #{tpu_custom_call.1} parent=1 // pred_check
      _
    $region43: #{tpu_custom_call.1} parent=1 // pred_check_branch
      %140 = sbr.rel (0) target = $region45
    $region44: #{tpu_custom_call.1} parent=1 // pred_region
      %142 = dma.done [#allocation6], 128
    $region45: #{tpu_custom_call.1} parent=1 // pred_fallthru
      _
    // Predicated region
    $region46: #{tpu_custom_call.1} parent=1 // pred_check
      _
    $region47: #{tpu_custom_call.1} parent=1 // pred_check_branch
      %144 = sbr.rel (0) target = $region49
    $region48: #{tpu_custom_call.1} parent=1 // pred_region
      %146 = dma.done [#allocation6], 256
    $region49: #{tpu_custom_call.1} parent=1 // pred_fallthru
      _
    // Predicated region
    $region50: #{tpu_custom_call.1} parent=1 // pred_check
      _
    $region51: #{tpu_custom_call.1} parent=1 // pred_check_branch
      %148 = sbr.rel (0) target = $region53
    $region52: #{tpu_custom_call.1} parent=1 // pred_region
      %150 = dma.done [#allocation9], 128
    $region53: #{tpu_custom_call.1} parent=1 // pred_fallthru
      _
    // Predicated region
    $region54: #{tpu_custom_call.1} parent=1 // pred_check
      _
    $region55: #{tpu_custom_call.1} parent=1 // pred_check_branch
      %152 = sbr.rel (0) target = $region57
    $region56: #{tpu_custom_call.1} parent=1 // pred_region
      %154 = dma.done [#allocation9], 1024
    $region57: #{tpu_custom_call.1} parent=1 // pred_fallthru
      _
    // Predicated region
    $region58: #{tpu_custom_call.1} parent=1 // pred_check
      _
    $region59: #{tpu_custom_call.1} parent=1 // pred_check_branch
      %156 = sbr.rel (0) target = $region61
    $region60: #{tpu_custom_call.1} parent=1 // pred_region
      %158 = dma.done [#allocation12], 1024
    $region61: #{tpu_custom_call.1} parent=1 // pred_fallthru
      _
    // Predicated region
    $region62: #{tpu_custom_call.1} parent=1 // pred_check
      _
    $region63: #{tpu_custom_call.1} parent=1 // pred_check_branch
      %160 = sbr.rel (0) target = $region65
    $region64: #{tpu_custom_call.1} parent=1 // pred_region
      %162 = dma.done [#allocation12], 1024
    $region65: #{tpu_custom_call.1} parent=1 // pred_fallthru
      _
    // Predicated region
    $region66: #{tpu_custom_call.1} parent=1 // pred_check
      _
    $region67: #{tpu_custom_call.1} parent=1 // pred_check_branch
      %164 = sbr.rel (0) target = $region69
    $region68: #{tpu_custom_call.1} parent=1 // pred_region
      %166 = dma.done [#allocation15], 1024
    $region69: #{tpu_custom_call.1} parent=1 // pred_fallthru
      _
    // Predicated region
    $region70: #{tpu_custom_call.1} parent=1 // pred_check
      _
    $region71: #{tpu_custom_call.1} parent=1 // pred_check_branch
      %168 = sbr.rel (0) target = $region73
    $region72: #{tpu_custom_call.1} parent=1 // pred_region
      %170 = dma.done [#allocation15], 128
    $region73: #{tpu_custom_call.1} parent=1 // pred_fallthru
      _
    %v172 = vld [vmem:[#allocation2] sm:$0xf]
    %v173 = vld [vmem:[#allocation2 + $0x4] sm:$0xf]
    %v174 = vld [vmem:[#allocation7] sm:$0xf]
    %v175 = vld [vmem:[#allocation7 + $0x4] sm:$0xf]
    %v176 = vld [vmem:[#allocation7 + $0x8] sm:$0xf]
    %v177 = vld [vmem:[#allocation7 + $0xc] sm:$0xf]
    %v178 = vld [vmem:[#allocation5] sm:$0xf]
    %v179 = vld [vmem:[#allocation5 + $0x4] sm:$0xf]
    %v180 = vld [vmem:[#allocation8] sm:$0xf]
    %v181 = vld [vmem:[#allocation8 + $0x4] sm:$0xf]
    %v184 = vunpack.c.l.b16 %v178
    %v185 = vunpack.c.l.b16 %v179
    %v186 = vpack.c.b16 %v185, %v184
    %v189 = vunpack.c.l.b16 %v180
    %v190 = vunpack.c.l.b16 %v181
    %v191 = vpack.c.b16 %v190, %v189
    %vm193 = vcmask 130048
    %v195 = vsel %vm193, %v186, 0
    %197 = vmatpush.bf16.msra.mxu0 0
    %198 = vmatpush.bf16.msra.mxu0 0
    %199 = vmatpush.bf16.msra.mxu0 0
    %200 = vmatpush.bf16.msra.mxu0 0
    %201 = vmatpush.bf16.msra.mxu0 0
    %202 = vmatpush.bf16.msra.mxu0 0
    %203 = vmatpush.bf16.msra.mxu0 0
    %204 = vmatpush.bf16.msra.mxu0 %v191
    %205 = vmatmul.bf16.gmra.mxu0 %v195
    %v206 = vpop.f32.mrf.mxu0
    %v207 = vadd.f32 0.0, %v206
    %v208 = vpop.f32.mrf.mxu0
    %v209 = vadd.f32 0.0, %v208
    %210 = vdwg.mxu0
    %v213 = vunpack.c.l.b16 %v172
    %v214 = vunpack.c.l.b16 %v173
    %v215 = vpack.c.b16 %v214, %v213
    %v220 = vunpack.c.l.b16 %v174
    %v221 = vunpack.c.l.b16 %v175
    %v222 = vunpack.c.l.b16 %v176
    %v223 = vunpack.c.l.b16 %v177
    %v224 = vpack.c.b16 %v221, %v220
    %v225 = vpack.c.b16 %v223, %v222
    %vm228 = vcmask 261120
    %v230 = vsel %vm228, %v215, 0
    %232 = vmatpush.bf16.msra.mxu0 0
    %233 = vmatpush.bf16.msra.mxu0 0
    %234 = vmatpush.bf16.msra.mxu0 0
    %235 = vmatpush.bf16.msra.mxu0 0
    %236 = vmatpush.bf16.msra.mxu0 0
    %237 = vmatpush.bf16.msra.mxu0 0
    %238 = vmatpush.bf16.msra.mxu0 %v225
    %239 = vmatpush.bf16.msra.mxu0 %v224
    %240 = vmatmul.bf16.gmra.mxu0 %v230
    %v241 = vpop.f32.mrf.mxu0
    %v242 = vadd.f32 %v207, %v241
    %v243 = vpop.f32.mrf.mxu0
    %v244 = vadd.f32 %v209, %v243
    %245 = vdwg.mxu0
    %v246 = vld [vmem:[#allocation16] sm:$0x1]
    %v247 = vperm.slane %v246, 0
    %v248 = vadd.f32 %v242, %v247
    %v249 = vadd.f32 %v244, %v247
    %vm250 = vcmp.gt.f32.partialorder %v248, 0.0
    %vm251 = vcmp.gt.f32.partialorder %v249, 0.0
    %v252 = vmin.f32 %v248, 0.0
    %v253 = vmin.f32 %v249, 0.0
    %v254 = vmul.f32 %v252, 1.442695
    %v255 = vpow.pop %v254
    %v256 = vmul.f32 %v253, 1.442695
    %v257 = vpow.pop %v256
    %v258 = vsub.f32 %v255, 1.0
    %v259 = vsub.f32 %v257, 1.0
    %v260 = vsel %vm250, %v248, %v258
    %v261 = vsel %vm251, %v249, %v259
    %v262 = vpack.c.bf16 %v261, %v260
    %v263 = vld [vmem:[#allocation10] sm:$0xf]
    %v264 = vld [vmem:[#allocation10 + $0x4] sm:$0xf]
    %v265 = vld [vmem:[#allocation10 + $0x8] sm:$0xf]
    %v266 = vld [vmem:[#allocation10 + $0xc] sm:$0xf]
    %v267 = vld [vmem:[#allocation10 + $0x10] sm:$0xf]
    %v268 = vld [vmem:[#allocation10 + $0x14] sm:$0xf]
    %v269 = vld [vmem:[#allocation10 + $0x18] sm:$0xf]
    %v270 = vld [vmem:[#allocation10 + $0x1c] sm:$0xf]
    %v271 = vld [vmem:[#allocation10 + $0x20] sm:$0xf]
    %v272 = vld [vmem:[#allocation10 + $0x24] sm:$0xf]
    %v273 = vld [vmem:[#allocation10 + $0x28] sm:$0xf]
    %v274 = vld [vmem:[#allocation10 + $0x2c] sm:$0xf]
    %v275 = vld [vmem:[#allocation10 + $0x30] sm:$0xf]
    %v276 = vld [vmem:[#allocation10 + $0x34] sm:$0xf]
    %v277 = vld [vmem:[#allocation10 + $0x38] sm:$0xf]
    %v278 = vld [vmem:[#allocation10 + $0x3c] sm:$0xf]
    %v279 = vld [vmem:[#allocation16 + $0x1] sm:$0x1]
    %v280 = vperm.slane %v279, 0
    %v297 = vunpack.c.l.b16 %v263
    %v298 = vunpack.c.l.b16 %v264
    %v299 = vunpack.c.l.b16 %v265
    %v300 = vunpack.c.l.b16 %v266
    %v301 = vunpack.c.l.b16 %v267
    %v302 = vunpack.c.l.b16 %v268
    %v303 = vunpack.c.l.b16 %v269
    %v304 = vunpack.c.l.b16 %v270
    %v305 = vunpack.c.l.b16 %v271
    %v306 = vunpack.c.l.b16 %v272
    %v307 = vunpack.c.l.b16 %v273
    %v308 = vunpack.c.l.b16 %v274
    %v309 = vunpack.c.l.b16 %v275
    %v310 = vunpack.c.l.b16 %v276
    %v311 = vunpack.c.l.b16 %v277
    %v312 = vunpack.c.l.b16 %v278
    %v313 = vpack.c.b16 %v298, %v297
    %v314 = vpack.c.b16 %v300, %v299
    %v315 = vpack.c.b16 %v302, %v301
    %v316 = vpack.c.b16 %v304, %v303
    %v317 = vpack.c.b16 %v306, %v305
    %v318 = vpack.c.b16 %v308, %v307
    %v319 = vpack.c.b16 %v310, %v309
    %v320 = vpack.c.b16 %v312, %v311
    %329 = vmatpush.bf16.msra.mxu0 %v320
    %330 = vmatpush.bf16.msra.mxu0 %v319
    %331 = vmatpush.bf16.msra.mxu0 %v318
    %332 = vmatpush.bf16.msra.mxu0 %v317
    %333 = vmatpush.bf16.msra.mxu0 %v316
    %334 = vmatpush.bf16.msra.mxu0 %v315
    %335 = vmatpush.bf16.msra.mxu0 %v314
    %336 = vmatpush.bf16.msra.mxu0 %v313
    %337 = vmatmul.bf16.gmra.mxu0 %v262
    %v338 = vpop.f32.mrf.mxu0
    %v339 = vadd.f32 %v280, %v338
    %v340 = vpop.f32.mrf.mxu0
    %v341 = vadd.f32 %v280, %v340
    %342 = vdwg.mxu0
    %vm343 = vcmp.gt.f32.partialorder %v339, 0.0
    %vm344 = vcmp.gt.f32.partialorder %v341, 0.0
    %v345 = vmin.f32 %v339, 0.0
    %v346 = vmin.f32 %v341, 0.0
    %v347 = vmul.f32 %v345, 1.442695
    %v348 = vpow.pop %v347
    %v349 = vmul.f32 %v346, 1.442695
    %v350 = vpow.pop %v349
    %v351 = vsub.f32 %v348, 1.0
    %v352 = vsub.f32 %v350, 1.0
    %v353 = vsel %vm343, %v339, %v351
    %v354 = vsel %vm344, %v341, %v352
    %v355 = vpack.c.bf16 %v354, %v353
    %v356 = vld [vmem:[#allocation11] sm:$0xf]
    %v357 = vld [vmem:[#allocation11 + $0x4] sm:$0xf]
    %v358 = vld [vmem:[#allocation11 + $0x8] sm:$0xf]
    %v359 = vld [vmem:[#allocation11 + $0xc] sm:$0xf]
    %v360 = vld [vmem:[#allocation11 + $0x10] sm:$0xf]
    %v361 = vld [vmem:[#allocation11 + $0x14] sm:$0xf]
    %v362 = vld [vmem:[#allocation11 + $0x18] sm:$0xf]
    %v363 = vld [vmem:[#allocation11 + $0x1c] sm:$0xf]
    %v364 = vld [vmem:[#allocation11 + $0x20] sm:$0xf]
    %v365 = vld [vmem:[#allocation11 + $0x24] sm:$0xf]
    %v366 = vld [vmem:[#allocation11 + $0x28] sm:$0xf]
    %v367 = vld [vmem:[#allocation11 + $0x2c] sm:$0xf]
    %v368 = vld [vmem:[#allocation11 + $0x30] sm:$0xf]
    %v369 = vld [vmem:[#allocation11 + $0x34] sm:$0xf]
    %v370 = vld [vmem:[#allocation11 + $0x38] sm:$0xf]
    %v371 = vld [vmem:[#allocation11 + $0x3c] sm:$0xf]
    %v372 = vld [vmem:[#allocation16 + $0x2] sm:$0x1]
    %v373 = vperm.slane %v372, 0
    %v390 = vunpack.c.l.b16 %v356
    %v391 = vunpack.c.l.b16 %v357
    %v392 = vunpack.c.l.b16 %v358
    %v393 = vunpack.c.l.b16 %v359
    %v394 = vunpack.c.l.b16 %v360
    %v395 = vunpack.c.l.b16 %v361
    %v396 = vunpack.c.l.b16 %v362
    %v397 = vunpack.c.l.b16 %v363
    %v398 = vunpack.c.l.b16 %v364
    %v399 = vunpack.c.l.b16 %v365
    %v400 = vunpack.c.l.b16 %v366
    %v401 = vunpack.c.l.b16 %v367
    %v402 = vunpack.c.l.b16 %v368
    %v403 = vunpack.c.l.b16 %v369
    %v404 = vunpack.c.l.b16 %v370
    %v405 = vunpack.c.l.b16 %v371
    %v406 = vpack.c.b16 %v391, %v390
    %v407 = vpack.c.b16 %v393, %v392
    %v408 = vpack.c.b16 %v395, %v394
    %v409 = vpack.c.b16 %v397, %v396
    %v410 = vpack.c.b16 %v399, %v398
    %v411 = vpack.c.b16 %v401, %v400
    %v412 = vpack.c.b16 %v403, %v402
    %v413 = vpack.c.b16 %v405, %v404
    %422 = vmatpush.bf16.msra.mxu0 %v413
    %423 = vmatpush.bf16.msra.mxu0 %v412
    %424 = vmatpush.bf16.msra.mxu0 %v411
    %425 = vmatpush.bf16.msra.mxu0 %v410
    %426 = vmatpush.bf16.msra.mxu0 %v409
    %427 = vmatpush.bf16.msra.mxu0 %v408
    %428 = vmatpush.bf16.msra.mxu0 %v407
    %429 = vmatpush.bf16.msra.mxu0 %v406
    %430 = vmatmul.bf16.gmra.mxu0 %v355
    %v431 = vpop.f32.mrf.mxu0
    %v432 = vadd.f32 %v373, %v431
    %v433 = vpop.f32.mrf.mxu0
    %v434 = vadd.f32 %v373, %v433
    %435 = vdwg.mxu0
    %vm436 = vcmp.gt.f32.partialorder %v432, 0.0
    %vm437 = vcmp.gt.f32.partialorder %v434, 0.0
    %v438 = vmin.f32 %v432, 0.0
    %v439 = vmin.f32 %v434, 0.0
    %v440 = vmul.f32 %v438, 1.442695
    %v441 = vpow.pop %v440
    %v442 = vmul.f32 %v439, 1.442695
    %v443 = vpow.pop %v442
    %v444 = vsub.f32 %v441, 1.0
    %v445 = vsub.f32 %v443, 1.0
    %v446 = vsel %vm436, %v432, %v444
    %v447 = vsel %vm437, %v434, %v445
    %v448 = vpack.c.bf16 %v447, %v446
    %v449 = vld [vmem:[#allocation13] sm:$0xf]
    %v450 = vld [vmem:[#allocation13 + $0x4] sm:$0xf]
    %v451 = vld [vmem:[#allocation13 + $0x8] sm:$0xf]
    %v452 = vld [vmem:[#allocation13 + $0xc] sm:$0xf]
    %v453 = vld [vmem:[#allocation13 + $0x10] sm:$0xf]
    %v454 = vld [vmem:[#allocation13 + $0x14] sm:$0xf]
    %v455 = vld [vmem:[#allocation13 + $0x18] sm:$0xf]
    %v456 = vld [vmem:[#allocation13 + $0x1c] sm:$0xf]
    %v457 = vld [vmem:[#allocation13 + $0x20] sm:$0xf]
    %v458 = vld [vmem:[#allocation13 + $0x24] sm:$0xf]
    %v459 = vld [vmem:[#allocation13 + $0x28] sm:$0xf]
    %v460 = vld [vmem:[#allocation13 + $0x2c] sm:$0xf]
    %v461 = vld [vmem:[#allocation13 + $0x30] sm:$0xf]
    %v462 = vld [vmem:[#allocation13 + $0x34] sm:$0xf]
    %v463 = vld [vmem:[#allocation13 + $0x38] sm:$0xf]
    %v464 = vld [vmem:[#allocation13 + $0x3c] sm:$0xf]
    %v465 = vld [vmem:[#allocation16 + $0x3] sm:$0x1]
    %v466 = vperm.slane %v465, 0
    %v483 = vunpack.c.l.b16 %v449
    %v484 = vunpack.c.l.b16 %v450
    %v485 = vunpack.c.l.b16 %v451
    %v486 = vunpack.c.l.b16 %v452
    %v487 = vunpack.c.l.b16 %v453
    %v488 = vunpack.c.l.b16 %v454
    %v489 = vunpack.c.l.b16 %v455
    %v490 = vunpack.c.l.b16 %v456
    %v491 = vunpack.c.l.b16 %v457
    %v492 = vunpack.c.l.b16 %v458
    %v493 = vunpack.c.l.b16 %v459
    %v494 = vunpack.c.l.b16 %v460
    %v495 = vunpack.c.l.b16 %v461
    %v496 = vunpack.c.l.b16 %v462
    %v497 = vunpack.c.l.b16 %v463
    %v498 = vunpack.c.l.b16 %v464
    %v499 = vpack.c.b16 %v484, %v483
    %v500 = vpack.c.b16 %v486, %v485
    %v501 = vpack.c.b16 %v488, %v487
    %v502 = vpack.c.b16 %v490, %v489
    %v503 = vpack.c.b16 %v492, %v491
    %v504 = vpack.c.b16 %v494, %v493
    %v505 = vpack.c.b16 %v496, %v495
    %v506 = vpack.c.b16 %v498, %v497
    %515 = vmatpush.bf16.msra.mxu0 %v506
    %516 = vmatpush.bf16.msra.mxu0 %v505
    %517 = vmatpush.bf16.msra.mxu0 %v504
    %518 = vmatpush.bf16.msra.mxu0 %v503
    %519 = vmatpush.bf16.msra.mxu0 %v502
    %520 = vmatpush.bf16.msra.mxu0 %v501
    %521 = vmatpush.bf16.msra.mxu0 %v500
    %522 = vmatpush.bf16.msra.mxu0 %v499
    %523 = vmatmul.bf16.gmra.mxu0 %v448
    %v524 = vpop.f32.mrf.mxu0
    %v525 = vadd.f32 %v466, %v524
    %v526 = vpop.f32.mrf.mxu0
    %v527 = vadd.f32 %v466, %v526
    %528 = vdwg.mxu0
    %vm529 = vcmp.gt.f32.partialorder %v525, 0.0
    %vm530 = vcmp.gt.f32.partialorder %v527, 0.0
    %v531 = vmin.f32 %v525, 0.0
    %v532 = vmin.f32 %v527, 0.0
    %v533 = vmul.f32 %v531, 1.442695
    %v534 = vpow.pop %v533
    %v535 = vmul.f32 %v532, 1.442695
    %v536 = vpow.pop %v535
    %v537 = vsub.f32 %v534, 1.0
    %v538 = vsub.f32 %v536, 1.0
    %v539 = vsel %vm529, %v525, %v537
    %v540 = vsel %vm530, %v527, %v538
    %v541 = vpack.c.bf16 %v540, %v539
    %v542 = vld [vmem:[#allocation14] sm:$0xf]
    %v543 = vld [vmem:[#allocation14 + $0x4] sm:$0xf]
    %v544 = vld [vmem:[#allocation14 + $0x8] sm:$0xf]
    %v545 = vld [vmem:[#allocation14 + $0xc] sm:$0xf]
    %v546 = vld [vmem:[#allocation14 + $0x10] sm:$0xf]
    %v547 = vld [vmem:[#allocation14 + $0x14] sm:$0xf]
    %v548 = vld [vmem:[#allocation14 + $0x18] sm:$0xf]
    %v549 = vld [vmem:[#allocation14 + $0x1c] sm:$0xf]
    %v550 = vld [vmem:[#allocation14 + $0x20] sm:$0xf]
    %v551 = vld [vmem:[#allocation14 + $0x24] sm:$0xf]
    %v552 = vld [vmem:[#allocation14 + $0x28] sm:$0xf]
    %v553 = vld [vmem:[#allocation14 + $0x2c] sm:$0xf]
    %v554 = vld [vmem:[#allocation14 + $0x30] sm:$0xf]
    %v555 = vld [vmem:[#allocation14 + $0x34] sm:$0xf]
    %v556 = vld [vmem:[#allocation14 + $0x38] sm:$0xf]
    %v557 = vld [vmem:[#allocation14 + $0x3c] sm:$0xf]
    %v558 = vld [vmem:[#allocation16 + $0x4] sm:$0x1]
    %v559 = vperm.slane %v558, 0
    %v576 = vunpack.c.l.b16 %v542
    %v577 = vunpack.c.l.b16 %v543
    %v578 = vunpack.c.l.b16 %v544
    %v579 = vunpack.c.l.b16 %v545
    %v580 = vunpack.c.l.b16 %v546
    %v581 = vunpack.c.l.b16 %v547
    %v582 = vunpack.c.l.b16 %v548
    %v583 = vunpack.c.l.b16 %v549
    %v584 = vunpack.c.l.b16 %v550
    %v585 = vunpack.c.l.b16 %v551
    %v586 = vunpack.c.l.b16 %v552
    %v587 = vunpack.c.l.b16 %v553
    %v588 = vunpack.c.l.b16 %v554
    %v589 = vunpack.c.l.b16 %v555
    %v590 = vunpack.c.l.b16 %v556
    %v591 = vunpack.c.l.b16 %v557
    %v592 = vpack.c.b16 %v577, %v576
    %v593 = vpack.c.b16 %v579, %v578
    %v594 = vpack.c.b16 %v581, %v580
    %v595 = vpack.c.b16 %v583, %v582
    %v596 = vpack.c.b16 %v585, %v584
    %v597 = vpack.c.b16 %v587, %v586
    %v598 = vpack.c.b16 %v589, %v588
    %v599 = vpack.c.b16 %v591, %v590
    %608 = vmatpush.bf16.msra.mxu0 %v599
    %609 = vmatpush.bf16.msra.mxu0 %v598
    %610 = vmatpush.bf16.msra.mxu0 %v597
    %611 = vmatpush.bf16.msra.mxu0 %v596
    %612 = vmatpush.bf16.msra.mxu0 %v595
    %613 = vmatpush.bf16.msra.mxu0 %v594
    %614 = vmatpush.bf16.msra.mxu0 %v593
    %615 = vmatpush.bf16.msra.mxu0 %v592
    %616 = vmatmul.bf16.gmra.mxu0 %v541
    %v617 = vpop.f32.mrf.mxu0
    %v618 = vadd.f32 %v559, %v617
    %v619 = vpop.f32.mrf.mxu0
    %v620 = vadd.f32 %v559, %v619
    %621 = vdwg.mxu0
    %622 = vmax.xlane.f32.xlu0 %v618
    %v623 = vpop.xlane.xlu0 %622
    %624 = vmax.xlane.f32.xlu0 %v620
    %v625 = vpop.xlane.xlu0 %624
    %v626 = vsub.f32 %v618, %v623
    %v627 = vsub.f32 %v620, %v625
    %v628 = vmul.f32 %v626, 1.442695
    %v629 = vpow.pop %v628
    %v630 = vmul.f32 %v627, 1.442695
    %v631 = vpow.pop %v630
    %632 = vadd.xlane.f32.xlu0 %v629
    %v633 = vpop.xlane.xlu0 %632
    %634 = vadd.xlane.f32.xlu0 %v631
    %v635 = vpop.xlane.xlu0 %634
    %v636 = vlog2.pop %v633
    %v637 = vmul.f32 %v636, 0.6931472
    %v638 = vlog2.pop %v635
    %v639 = vmul.f32 %v638, 0.6931472
    %v640 = vsub.f32 %v626, %v637
    %v641 = vsub.f32 %v627, %v639
    %642 = vst [vmem:[#allocation17] sm:$0xff] %v640
    %643 = vst [vmem:[#allocation17 + $0x8] sm:$0xff] %v641
    // Predicated region
    $region74: #{tpu_custom_call.1} parent=1 // pred_check
      _
    $region75: #{tpu_custom_call.1} parent=1 // pred_check_branch
      %645 = sbr.rel (0) target = $region77
    $region76: #{tpu_custom_call.1} parent=1 // pred_region
      %647 = vsyncadd [#allocation4], 0
      %s648 = sshll.u32 [#allocation17], 4
      %s649 = int_to_ptr.vmem [resolvable:$true] %s648
      %s650 = sshll.u32 %s9, 4
      %s651 = int_to_ptr.hbm [resolvable:$true] %s650
      %656 = dma.vmem_to_hbm [thread:$0]  %s649, 256, %s651, [#allocation4], 128, 128, 8
    $region77: #{tpu_custom_call.1} parent=1 // pred_fallthru
      _
    // Predicated region
    $region78: #{tpu_custom_call.1} parent=1 // pred_check
      _
    $region79: #{tpu_custom_call.1} parent=1 // pred_check_branch
      %658 = sbr.rel (0) target = $region81
    $region80: #{tpu_custom_call.1} parent=1 // pred_region
      %660 = dma.done [#allocation4], 256
    $region81: #{tpu_custom_call.1} parent=1 // pred_fallthru
      _
    %661 = vsyncpa [#allocation3], 1
    %662 = vsyncpa [#allocation6], 1
    %663 = vsyncpa [#allocation9], 1
    %664 = vsyncpa [#allocation12], 1
    %665 = vsyncpa [#allocation15], 1
    %666 = vsyncpa [#allocation4], 1

</llo_original>
